<compile_context>
chip_gen: v7x
topology: tpu7x:2x2x1
jax: 0.10.0
libtpu: 0.0.40
codegen_flags: <defaults>
</compile_context>

<pallas_src>
import jax
import jax.numpy as jnp
from jax.experimental import pallas as pl
from jax.experimental.pallas import tpu as pltpu


def _round_up(n, m):
    return (n + m - 1) // m * m


# Sublane packing per itemsize (rows per 32-bit sublane group).
_SUBLANES = {1: 32, 2: 16, 4: 8, 8: 8}


def _logreg_kernel(x_ref, w_ref, b_ref, o_ref):
    # x_ref: (TB, D) VMEM, native input dtype; w_ref: (1, D) VMEM (x.dtype);
    # b_ref: (1, 1) f32 SMEM scalar; o_ref: (1, TB) f32 VMEM (lane-dense row).
    x = x_ref[...]
    w = w_ref[...]
    if x.dtype != w.dtype:          # trace-time only (e.g. integer inputs)
        x = x.astype(w.dtype)
    # (1, D) . (TB, D)^T -> (1, TB): standard q.k^T contraction, output already
    # lane-dense. HIGHEST precision so f32 inputs match the f32 reference.
    z = jax.lax.dot_general(
        w, x,
        dimension_numbers=(((1,), (1,)), ((), ())),
        preferred_element_type=jnp.float32,
        precision=jax.lax.Precision.HIGHEST,
    )
    o_ref[...] = jax.nn.sigmoid(z + b_ref[0, 0])


def logistic_regression(x, weight, bias):
    """x: (B, D); weight: (1, D) as in nn.Linear(D, 1); bias: (1,). Returns (B, 1) f32."""
    B, D = x.shape
    assert weight.shape == (1, D)

    itemsize = jnp.dtype(x.dtype).itemsize
    sublanes = _SUBLANES.get(itemsize, 8)
    lanes = _round_up(D, 128)
    row_bytes = lanes * itemsize          # lane-padded VMEM bytes per x row

    # Keep the weight in x's dtype (native MXU rate; avoids a per-tile VALU cast
    # pass over the whole x tile). Non-float inputs fall back to f32 weights.
    if jnp.issubdtype(x.dtype, jnp.floating):
        w = weight.astype(x.dtype)
    else:
        w = weight.astype(jnp.float32)
    b_arr = bias.reshape(1, 1).astype(jnp.float32)   # SMEM scalar

    # --- generation-aware VMEM budget --------------------------------------
    try:
        vmem_cap = int(pltpu.get_tpu_info().vmem_capacity_bytes)
    except Exception:  # pragma: no cover - conservative fallback (v7x-sized)
        vmem_cap = 64 * 1024 * 1024
    # Total budget for both pipelined x buffers: <=1/3 of physical VMEM, capped
    # at 24 MiB (safe on v7x's 64 MiB; generous on v5e/v6e's 128 MiB).
    x_buffers_budget = min(vmem_cap // 3, 24 * 1024 * 1024)
    per_buf_cap = x_buffers_budget // 2
    # Roofline target: ~2 MiB per x tile already reaches >=85% of HBM BW.
    per_buf_target = min(per_buf_cap, 2 * 1024 * 1024)

    # --- choose batch tile TB ----------------------------------------------
    if B <= 128:
        # Single small tile; block equals (sublane-rounded) full batch.
        tb = _round_up(B, sublanes)
    else:
        tb = max(128, (per_buf_target // row_bytes) // 128 * 128)
        # v7x: ensure >=2 (prefer 4) tiles so the "parallel" axis feeds both
        # TensorCores and the DMA/compute pipeline exists.
        n_tiles_target = min(4, pl.cdiv(B, 128))
        tb = min(tb, _round_up(pl.cdiv(B, n_tiles_target), 128))

    grid_b = pl.cdiv(B, tb)
    b_out = grid_b * tb                   # output row padded (4 bytes/row, cheap)

    # --- VMEM footprint & limit (lane/sublane-padded) -----------------------
    x_tile_bytes = _round_up(tb, sublanes) * row_bytes
    out_tile_bytes = 8 * _round_up(tb, 128) * 4
    w_tile_bytes = 8 * lanes * jnp.dtype(w.dtype).itemsize
    footprint = 2 * x_tile_bytes + 2 * out_tile_bytes + w_tile_bytes + (1 << 20)
    vmem_limit = int(min(3 * vmem_cap // 4,
                         max(2 * footprint, 32 * 1024 * 1024)))

    out_row = pl.pallas_call(
        _logreg_kernel,
        out_shape=jax.ShapeDtypeStruct((1, b_out), jnp.float32),
        grid=(grid_b,),
        in_specs=[
            pl.BlockSpec((tb, D), lambda i: (i, 0)),              # x: streamed tiles
            pl.BlockSpec((1, D), lambda i: (0, 0)),               # weight: resident
            pl.BlockSpec(memory_space=pltpu.MemorySpace.SMEM),    # bias: SMEM scalar
        ],
        out_specs=pl.BlockSpec((1, tb), lambda i: (0, i)),        # lane-dense row
        compiler_params=pltpu.CompilerParams(
            dimension_semantics=("parallel",),
            vmem_limit_bytes=vmem_limit,
        ),
        cost_estimate=pl.CostEstimate(
            flops=2 * B * D,
            transcendentals=B,
            bytes_accessed=B * D * itemsize + D * itemsize + b_out * 4,
        ),
    )(x, w, b_arr)

    return out_row[0, :B].reshape(B, 1)


if __name__ == "__main__":
    key = jax.random.PRNGKey(0)
    kx, kw, kb, kx2 = jax.random.split(key, 4)

    # Small shapes consistent with the module: batch=8, input_dim=32.
    batch, input_dim = 8, 32
    x = jax.random.normal(kx, (batch, input_dim), dtype=jnp.float32)

    # Deterministic params mimicking nn.Linear(input_dim, 1) init.
    bound = 1.0 / float(input_dim) ** 0.5
    weight = jax.random.uniform(kw, (1, input_dim), minval=-bound, maxval=bound,
                                dtype=jnp.float32)
    bias = jax.random.uniform(kb, (1,), minval=-bound, maxval=bound,
                              dtype=jnp.float32)

    out = jax.block_until_ready(logistic_regression(x, weight, bias))
    ref = jax.nn.sigmoid(x @ weight.T + bias)
    assert out.shape == (batch, 1)
    assert jnp.allclose(out, ref, atol=1e-5, rtol=1e-5)

    # Ragged multi-tile path: grid > 1, partial last x block, no wrapper-side pad.
    batch2 = 300
    x2 = jax.random.normal(kx2, (batch2, input_dim), dtype=jnp.float32)
    out2 = jax.block_until_ready(logistic_regression(x2, weight, bias))
    ref2 = jax.nn.sigmoid(x2 @ weight.T + bias)
    assert out2.shape == (batch2, 1)
    assert jnp.allclose(out2, ref2, atol=1e-5, rtol=1e-5)

    print("KERNEL_OK")
</pallas_src>

<mosaic_0001>
module attributes {stable_mosaic.version = 11 : i64} {
  func.func @_logreg_kernel(%arg0: i32, %arg1: memref<8x32xf32, #tpu.memory_space<vmem>>, %arg2: memref<1x32xf32, #tpu.memory_space<vmem>>, %arg3: memref<1x1xf32, #tpu.memory_space<smem>>, %arg4: memref<1x8xf32, #tpu.memory_space<vmem>>) attributes {dimension_semantics = [#tpu.dimension_semantics<parallel>], iteration_bounds = array<i64: 1>, scalar_prefetch = 0 : i64, scratch_operands = 0 : i64, tpu.core_type = #tpu.core_type<tc>, window_params = [{transform_indices = @transform_0, window_bounds = array<i64: 8, 32>}, {pipeline_mode = #tpu.pipeline_mode<synchronous>, transform_indices = @transform_1, window_bounds = array<i64: 1, 32>}, {transform_indices = @transform_2, window_bounds = array<i64: 1, 1>}, {transform_indices = @transform_3, window_bounds = array<i64: 1, 8>}]} {
    %c0 = arith.constant 0 : index
    %c0_0 = arith.constant 0 : index
    %0 = vector.load %arg1[%c0, %c0_0] : memref<8x32xf32, #tpu.memory_space<vmem>>, vector<8x32xf32>
    %c0_1 = arith.constant 0 : index
    %c0_2 = arith.constant 0 : index
    %1 = vector.load %arg2[%c0_1, %c0_2] : memref<1x32xf32, #tpu.memory_space<vmem>>, vector<1x32xf32>
    %cst = arith.constant dense<0.000000e+00> : vector<1x8xf32>
    %2 = tpu.matmul %1, %0, %cst {dimension_numbers = #tpu.dot_dimension_numbers<[1], [1], [0], [0], [0, 0, 1, 0], [], []>, precision = #tpu.contract_precision<fp32>} : vector<1x32xf32>, vector<8x32xf32>, vector<1x8xf32> -> vector<1x8xf32>
    %c0_3 = arith.constant 0 : index
    %c0_4 = arith.constant 0 : index
    %3 = memref.load %arg3[%c0_3, %c0_4] : memref<1x1xf32, #tpu.memory_space<smem>>
    %4 = vector.broadcast %3 : f32 to vector<1x8xf32>
    %5 = arith.addf %2, %4 : vector<1x8xf32>
    %6 = arith.negf %5 : vector<1x8xf32>
    %7 = math.exp %6 : vector<1x8xf32>
    %cst_5 = arith.constant 1.000000e+00 : f32
    %8 = vector.broadcast %cst_5 : f32 to vector<1x8xf32>
    %9 = arith.addf %8, %7 : vector<1x8xf32>
    %10 = arith.divf %8, %9 : vector<1x8xf32>
    %c0_6 = arith.constant 0 : index
    %c0_7 = arith.constant 0 : index
    %11 = vector.load %arg4[%c0_6, %c0_7] : memref<1x8xf32, #tpu.memory_space<vmem>>, vector<1x8xf32>
    tpu.vector_store %arg4[%c0_6, %c0_7], %10 {strides = array<i32>} : memref<1x8xf32, #tpu.memory_space<vmem>>, vector<1x8xf32>,
    return
  }
  func.func @transform_0(%arg0: i32) -> (i32, i32) {
    %c0_i32 = arith.constant 0 : i32
    %c0_i32_0 = arith.constant 0 : i32
    return %arg0, %c0_i32 : i32, i32
  }
  func.func @transform_1(%arg0: i32) -> (i32, i32) {
    %c0_i32 = arith.constant 0 : i32
    %c0_i32_0 = arith.constant 0 : i32
    %c0_i32_1 = arith.constant 0 : i32
    return %c0_i32, %c0_i32_0 : i32, i32
  }
  func.func @transform_2(%arg0: i32) -> (i32, i32) {
    %c0_i32 = arith.constant 0 : i32
    %c0_i32_0 = arith.constant 0 : i32
    %c0_i32_1 = arith.constant 0 : i32
    return %c0_i32, %c0_i32_0 : i32, i32
  }
  func.func @transform_3(%arg0: i32) -> (i32, i32) {
    %c0_i32 = arith.constant 0 : i32
    %c0_i32_0 = arith.constant 0 : i32
    return %c0_i32, %arg0 : i32, i32
  }
}

</mosaic_0001>

<llo_original>
// kernel: tpu_custom_call.1
$region0: #{tpu_custom_call.1}
  #allocation0 [shape = 'u32[]', space=smem, size = 0x4, offset = 0x4, fixed_abs, tag = 'smem constant byte address 0x4 - core index']
  #allocation1 [shape = 'u32[144,128]{1,0:T(1,128)}', space=vmem, size = 0x12000, scoped, tag = 'internal scratch']
  #allocation2 [shape = 'f32[1,1]{1,0:T(1,128)S(6)}', space=smem, size = 0x200, scoped, tag = 'scoped memory for tpu_custom_call.1']
  %s0 = inlined_call_operand.hbm [shape: f32[8,32], index: 0, kind: input, shape index: {}]
  %s1 = inlined_call_operand.vmem [shape: f32[1,32], index: 1, kind: input, shape index: {}]
  %s2 = inlined_call_operand.<no memory space> [shape: f32[1,1], index: 2, kind: input, shape index: {}]
  %s3 = inlined_call_operand.hbm [shape: f32[1,8], index: 3, kind: output, shape index: {}]
  %s4 = sld [smem:[#allocation0]]
  $region26: #{tpu_custom_call.1} parent=0
    _
  %s6 = ssub.s32 1, %s4
  %s7 = scalar_select 0, %s6, %s4
  %8 = sst [smem:[#allocation2]] %s2
  $region1: #{tpu_custom_call.1} parent=0
    #allocation3 [shape = 'u8[4096]{0}', space=vmem, size = 0x1000, scoped, tag = 'input window, operand 0, single buffered']
    #allocation4 [shape = 's32[1]{0}', space=sflag, size = 0x4, scoped, tag = 'scoped memory for tpu_custom_call.1']
    #allocation5 [shape = 's32[1]{0}', space=sflag, size = 0x4, scoped, tag = 'scoped memory for tpu_custom_call.1']
    #allocation6 [shape = 'u8[512]{0}', space=vmem, size = 0x400, scoped, tag = 'output window, operand 0, single buffered']
    %9 = vsyncpa [#allocation4], 0
    %10 = vsyncpa [#allocation5], 0
    // Predicated region
    $region2: #{tpu_custom_call.1} parent=1 // pred_check
      _
    $region3: #{tpu_custom_call.1} parent=1 // pred_check_branch
      %12 = sbr.rel (0) target = $region5
    $region4: #{tpu_custom_call.1} parent=1 // pred_region
      %s14 = ssub.s32 128, 128
      %15 = vsyncadd [#allocation4], %s14
      %s17 = sshll.u32 [#allocation3], 4
      %s18 = int_to_ptr.vmem [resolvable:$true] %s17
      %20 = dma.hbm_to_vmem [thread:$0]  %s0, 128, %s18, [#allocation4]
    $region5: #{tpu_custom_call.1} parent=1 // pred_fallthru
      _
    // Predicated region
    $region6: #{tpu_custom_call.1} parent=1 // pred_check
      _
    $region7: #{tpu_custom_call.1} parent=1 // pred_check_branch
      %22 = sbr.rel (0) target = $region9
    $region8: #{tpu_custom_call.1} parent=1 // pred_region
      _
    $region9: #{tpu_custom_call.1} parent=1 // pred_fallthru
      _
    // Predicated region
    $region10: #{tpu_custom_call.1} parent=1 // pred_check
      _
    $region11: #{tpu_custom_call.1} parent=1 // pred_check_branch
      %24 = sbr.rel (0) target = $region13
    $region12: #{tpu_custom_call.1} parent=1 // pred_region
      _
    $region13: #{tpu_custom_call.1} parent=1 // pred_fallthru
      _
    // Predicated region
    $region14: #{tpu_custom_call.1} parent=1 // pred_check
      _
    $region15: #{tpu_custom_call.1} parent=1 // pred_check_branch
      %26 = sbr.rel (0) target = $region17
    $region16: #{tpu_custom_call.1} parent=1 // pred_region
      %27 = dma.done [#allocation4], 128
    $region17: #{tpu_custom_call.1} parent=1 // pred_fallthru
      _
    %v28 = vld [vmem:[#allocation3] sm:$0xff]
    %v29 = vld [vmem:[%s1] sm:$0x1]
    %s30 = sld [smem:[#allocation2]]
    %v31 = vstv %s30
    %vm32 = vcmask 261120
    %v34 = vsel %vm32, %v29, 0
    %v37 = vsel %vm32, %v28, 0
    %39 = vmatprep.subr.mxu0 0.0
    %v40 = vand.u32 %v37, 4294901760
    %41 = vmatpush1.xpose.msra.mxu0 %v40
    %42 = vmatprep.subr.mxu0 0.0
    %43 = vmatpush1.xpose.msra.mxu0 0.0
    %44 = vmatprep.subr.mxu0 0.0
    %45 = vmatpush1.xpose.msra.mxu0 0.0
    %46 = vmatprep.subr.mxu0 0.0
    %47 = vmatpush1.xpose.msra.mxu0 0.0
    %48 = vmatprep.subr.mxu0 0.0
    %49 = vmatpush1.xpose.msra.mxu0 0.0
    %50 = vmatprep.subr.mxu0 0.0
    %51 = vmatpush1.xpose.msra.mxu0 0.0
    %52 = vmatprep.subr.mxu0 0.0
    %53 = vmatpush1.xpose.msra.mxu0 0.0
    %54 = vmatprep.subr.mxu0 0.0
    %55 = vmatpush1.xpose.msra.mxu0 0.0
    %56 = vmatprep.subr.mxu0 0.0
    %57 = vmatpush1.xpose.msra.mxu0 0.0
    %58 = vmatprep.subr.mxu0 0.0
    %59 = vmatpush1.xpose.msra.mxu0 0.0
    %60 = vmatprep.subr.mxu0 0.0
    %61 = vmatpush1.xpose.msra.mxu0 0.0
    %62 = vmatprep.subr.mxu0 0.0
    %63 = vmatpush1.xpose.msra.mxu0 0.0
    %64 = vmatprep.subr.mxu0 0.0
    %65 = vmatpush1.xpose.msra.mxu0 0.0
    %66 = vmatprep.subr.mxu0 0.0
    %67 = vmatpush1.xpose.msra.mxu0 0.0
    %68 = vmatprep.subr.mxu0 0.0
    %69 = vmatpush1.xpose.msra.mxu0 0.0
    %70 = vmatprep.subr.mxu0 0.0
    %71 = vmatpush1.xpose.msra.mxu0 0.0
    %72 = vmatprep.subr.mxu0 0.0
    %73 = vmatpush1.xpose.msra.mxu0 0.0
    %74 = vmatprep.subr.mxu0 0.0
    %75 = vmatpush1.xpose.msra.mxu0 0.0
    %76 = vmatprep.subr.mxu0 0.0
    %77 = vmatpush1.xpose.msra.mxu0 0.0
    %78 = vmatprep.subr.mxu0 0.0
    %79 = vmatpush1.xpose.msra.mxu0 0.0
    %80 = vmatprep.subr.mxu0 0.0
    %81 = vmatpush1.xpose.msra.mxu0 0.0
    %82 = vmatprep.subr.mxu0 0.0
    %83 = vmatpush1.xpose.msra.mxu0 0.0
    %84 = vmatprep.subr.mxu0 0.0
    %85 = vmatpush1.xpose.msra.mxu0 0.0
    %86 = vmatprep.subr.mxu0 0.0
    %87 = vmatpush1.xpose.msra.mxu0 0.0
    %88 = vmatprep.subr.mxu0 0.0
    %89 = vmatpush1.xpose.msra.mxu0 0.0
    %90 = vmatprep.subr.mxu0 0.0
    %91 = vmatpush1.xpose.msra.mxu0 0.0
    %92 = vmatprep.subr.mxu0 0.0
    %93 = vmatpush1.xpose.msra.mxu0 0.0
    %94 = vmatprep.subr.mxu0 0.0
    %95 = vmatpush1.xpose.msra.mxu0 0.0
    %96 = vmatprep.subr.mxu0 0.0
    %97 = vmatpush1.xpose.msra.mxu0 0.0
    %98 = vmatprep.subr.mxu0 0.0
    %99 = vmatpush1.xpose.msra.mxu0 0.0
    %100 = vmatprep.subr.mxu0 0.0
    %101 = vmatpush1.xpose.msra.mxu0 0.0
    %102 = vmatprep.subr.mxu0 0.0
    %103 = vmatpush1.xpose.msra.mxu0 0.0
    %104 = vmatprep.mubr.f32.mxu0 0.0
    %v105 = vand.u32 %v34, 4294901760
    %v106 = vsub.f32 %v34, %v105
    %v107 = vand.u32 %v106, 4294901760
    %v108 = vsub.f32 %v106, %v107
    %v109 = vand.u32 %v108, 4294901760
    %110 = vmatmul.mubr.f32.gmra.mrb[0].mxu0 %v109
    %v111 = vpop.f32.mrb[0].mxu0
    %v112 = vadd.f32 %v31, %v111
    %v113 = vpop.f32.mrb[0].mxu0
    %114 = vdwg.mxu0
    %115 = vmatprep.subr.mxu0 0.0
    %v116 = vand.u32 %v37, 4294901760
    %v117 = vsub.f32 %v37, %v116
    %v118 = vand.u32 %v117, 4294901760
    %v119 = vsub.f32 %v117, %v118
    %v120 = vand.u32 %v119, 4294901760
    %121 = vmatpush1.xpose.msra.mxu0 %v120
    %122 = vmatprep.subr.mxu0 0.0
    %123 = vmatpush1.xpose.msra.mxu0 0.0
    %124 = vmatprep.subr.mxu0 0.0
    %125 = vmatpush1.xpose.msra.mxu0 0.0
    %126 = vmatprep.subr.mxu0 0.0
    %127 = vmatpush1.xpose.msra.mxu0 0.0
    %128 = vmatprep.subr.mxu0 0.0
    %129 = vmatpush1.xpose.msra.mxu0 0.0
    %130 = vmatprep.subr.mxu0 0.0
    %131 = vmatpush1.xpose.msra.mxu0 0.0
    %132 = vmatprep.subr.mxu0 0.0
    %133 = vmatpush1.xpose.msra.mxu0 0.0
    %134 = vmatprep.subr.mxu0 0.0
    %135 = vmatpush1.xpose.msra.mxu0 0.0
    %136 = vmatprep.subr.mxu0 0.0
    %137 = vmatpush1.xpose.msra.mxu0 0.0
    %138 = vmatprep.subr.mxu0 0.0
    %139 = vmatpush1.xpose.msra.mxu0 0.0
    %140 = vmatprep.subr.mxu0 0.0
    %141 = vmatpush1.xpose.msra.mxu0 0.0
    %142 = vmatprep.subr.mxu0 0.0
    %143 = vmatpush1.xpose.msra.mxu0 0.0
    %144 = vmatprep.subr.mxu0 0.0
    %145 = vmatpush1.xpose.msra.mxu0 0.0
    %146 = vmatprep.subr.mxu0 0.0
    %147 = vmatpush1.xpose.msra.mxu0 0.0
    %148 = vmatprep.subr.mxu0 0.0
    %149 = vmatpush1.xpose.msra.mxu0 0.0
    %150 = vmatprep.subr.mxu0 0.0
    %151 = vmatpush1.xpose.msra.mxu0 0.0
    %152 = vmatprep.subr.mxu0 0.0
    %153 = vmatpush1.xpose.msra.mxu0 0.0
    %154 = vmatprep.subr.mxu0 0.0
    %155 = vmatpush1.xpose.msra.mxu0 0.0
    %156 = vmatprep.subr.mxu0 0.0
    %157 = vmatpush1.xpose.msra.mxu0 0.0
    %158 = vmatprep.subr.mxu0 0.0
    %159 = vmatpush1.xpose.msra.mxu0 0.0
    %160 = vmatprep.subr.mxu0 0.0
    %161 = vmatpush1.xpose.msra.mxu0 0.0
    %162 = vmatprep.subr.mxu0 0.0
    %163 = vmatpush1.xpose.msra.mxu0 0.0
    %164 = vmatprep.subr.mxu0 0.0
    %165 = vmatpush1.xpose.msra.mxu0 0.0
    %166 = vmatprep.subr.mxu0 0.0
    %167 = vmatpush1.xpose.msra.mxu0 0.0
    %168 = vmatprep.subr.mxu0 0.0
    %169 = vmatpush1.xpose.msra.mxu0 0.0
    %170 = vmatprep.subr.mxu0 0.0
    %171 = vmatpush1.xpose.msra.mxu0 0.0
    %172 = vmatprep.subr.mxu0 0.0
    %173 = vmatpush1.xpose.msra.mxu0 0.0
    %174 = vmatprep.subr.mxu0 0.0
    %175 = vmatpush1.xpose.msra.mxu0 0.0
    %176 = vmatprep.subr.mxu0 0.0
    %177 = vmatpush1.xpose.msra.mxu0 0.0
    %178 = vmatprep.subr.mxu0 0.0
    %179 = vmatpush1.xpose.msra.mxu0 0.0
    %180 = vmatprep.subr.mxu0 0.0
    %181 = vmatpush1.xpose.msra.mxu0 0.0
    %182 = vmatprep.subr.mxu0 0.0
    %183 = vmatpush1.xpose.msra.mxu0 0.0
    %184 = vmatprep.mubr.f32.mxu0 0.0
    %v185 = vand.u32 %v34, 4294901760
    %186 = vmatmul.mubr.f32.gmra.mrb[0].mxu0 %v185
    %v187 = vpop.f32.mrb[0].mxu0
    %v188 = vadd.f32 %v112, %v187
    %v189 = vpop.f32.mrb[0].mxu0
    %190 = vdwg.mxu0
    %191 = vmatprep.subr.mxu0 0.0
    %v192 = vand.u32 %v37, 4294901760
    %v193 = vsub.f32 %v37, %v192
    %194 = vmatpush1.xpose.msra.mxu0 %v193
    %195 = vmatprep.subr.mxu0 0.0
    %196 = vmatpush1.xpose.msra.mxu0 0.0
    %197 = vmatprep.subr.mxu0 0.0
    %198 = vmatpush1.xpose.msra.mxu0 0.0
    %199 = vmatprep.subr.mxu0 0.0
    %200 = vmatpush1.xpose.msra.mxu0 0.0
    %201 = vmatprep.subr.mxu0 0.0
    %202 = vmatpush1.xpose.msra.mxu0 0.0
    %203 = vmatprep.subr.mxu0 0.0
    %204 = vmatpush1.xpose.msra.mxu0 0.0
    %205 = vmatprep.subr.mxu0 0.0
    %206 = vmatpush1.xpose.msra.mxu0 0.0
    %207 = vmatprep.subr.mxu0 0.0
    %208 = vmatpush1.xpose.msra.mxu0 0.0
    %209 = vmatprep.subr.mxu0 0.0
    %210 = vmatpush1.xpose.msra.mxu0 0.0
    %211 = vmatprep.subr.mxu0 0.0
    %212 = vmatpush1.xpose.msra.mxu0 0.0
    %213 = vmatprep.subr.mxu0 0.0
    %214 = vmatpush1.xpose.msra.mxu0 0.0
    %215 = vmatprep.subr.mxu0 0.0
    %216 = vmatpush1.xpose.msra.mxu0 0.0
    %217 = vmatprep.subr.mxu0 0.0
    %218 = vmatpush1.xpose.msra.mxu0 0.0
    %219 = vmatprep.subr.mxu0 0.0
    %220 = vmatpush1.xpose.msra.mxu0 0.0
    %221 = vmatprep.subr.mxu0 0.0
    %222 = vmatpush1.xpose.msra.mxu0 0.0
    %223 = vmatprep.subr.mxu0 0.0
    %224 = vmatpush1.xpose.msra.mxu0 0.0
    %225 = vmatprep.subr.mxu0 0.0
    %226 = vmatpush1.xpose.msra.mxu0 0.0
    %227 = vmatprep.subr.mxu0 0.0
    %228 = vmatpush1.xpose.msra.mxu0 0.0
    %229 = vmatprep.subr.mxu0 0.0
    %230 = vmatpush1.xpose.msra.mxu0 0.0
    %231 = vmatprep.subr.mxu0 0.0
    %232 = vmatpush1.xpose.msra.mxu0 0.0
    %233 = vmatprep.subr.mxu0 0.0
    %234 = vmatpush1.xpose.msra.mxu0 0.0
    %235 = vmatprep.subr.mxu0 0.0
    %236 = vmatpush1.xpose.msra.mxu0 0.0
    %237 = vmatprep.subr.mxu0 0.0
    %238 = vmatpush1.xpose.msra.mxu0 0.0
    %239 = vmatprep.subr.mxu0 0.0
    %240 = vmatpush1.xpose.msra.mxu0 0.0
    %241 = vmatprep.subr.mxu0 0.0
    %242 = vmatpush1.xpose.msra.mxu0 0.0
    %243 = vmatprep.subr.mxu0 0.0
    %244 = vmatpush1.xpose.msra.mxu0 0.0
    %245 = vmatprep.subr.mxu0 0.0
    %246 = vmatpush1.xpose.msra.mxu0 0.0
    %247 = vmatprep.subr.mxu0 0.0
    %248 = vmatpush1.xpose.msra.mxu0 0.0
    %249 = vmatprep.subr.mxu0 0.0
    %250 = vmatpush1.xpose.msra.mxu0 0.0
    %251 = vmatprep.subr.mxu0 0.0
    %252 = vmatpush1.xpose.msra.mxu0 0.0
    %253 = vmatprep.subr.mxu0 0.0
    %254 = vmatpush1.xpose.msra.mxu0 0.0
    %255 = vmatprep.subr.mxu0 0.0
    %256 = vmatpush1.xpose.msra.mxu0 0.0
    %257 = vmatprep.mubr.f32.mxu0 0.0
    %v258 = vand.u32 %v34, 4294901760
    %v259 = vsub.f32 %v34, %v258
    %260 = vmatmul.mubr.f32.gmra.mrb[0].mxu0 %v259
    %v261 = vpop.f32.mrb[0].mxu0
    %v262 = vadd.f32 %v188, %v261
    %v263 = vpop.f32.mrb[0].mxu0
    %264 = vdwg.mxu0
    %265 = vmatprep.subr.mxu0 0.0
    %v266 = vand.u32 %v37, 4294901760
    %267 = vmatpush1.xpose.msra.mxu0 %v266
    %268 = vmatprep.subr.mxu0 0.0
    %269 = vmatpush1.xpose.msra.mxu0 0.0
    %270 = vmatprep.subr.mxu0 0.0
    %271 = vmatpush1.xpose.msra.mxu0 0.0
    %272 = vmatprep.subr.mxu0 0.0
    %273 = vmatpush1.xpose.msra.mxu0 0.0
    %274 = vmatprep.subr.mxu0 0.0
    %275 = vmatpush1.xpose.msra.mxu0 0.0
    %276 = vmatprep.subr.mxu0 0.0
    %277 = vmatpush1.xpose.msra.mxu0 0.0
    %278 = vmatprep.subr.mxu0 0.0
    %279 = vmatpush1.xpose.msra.mxu0 0.0
    %280 = vmatprep.subr.mxu0 0.0
    %281 = vmatpush1.xpose.msra.mxu0 0.0
    %282 = vmatprep.subr.mxu0 0.0
    %283 = vmatpush1.xpose.msra.mxu0 0.0
    %284 = vmatprep.subr.mxu0 0.0
    %285 = vmatpush1.xpose.msra.mxu0 0.0
    %286 = vmatprep.subr.mxu0 0.0
    %287 = vmatpush1.xpose.msra.mxu0 0.0
    %288 = vmatprep.subr.mxu0 0.0
    %289 = vmatpush1.xpose.msra.mxu0 0.0
    %290 = vmatprep.subr.mxu0 0.0
    %291 = vmatpush1.xpose.msra.mxu0 0.0
    %292 = vmatprep.subr.mxu0 0.0
    %293 = vmatpush1.xpose.msra.mxu0 0.0
    %294 = vmatprep.subr.mxu0 0.0
    %295 = vmatpush1.xpose.msra.mxu0 0.0
    %296 = vmatprep.subr.mxu0 0.0
    %297 = vmatpush1.xpose.msra.mxu0 0.0
    %298 = vmatprep.subr.mxu0 0.0
    %299 = vmatpush1.xpose.msra.mxu0 0.0
    %300 = vmatprep.subr.mxu0 0.0
    %301 = vmatpush1.xpose.msra.mxu0 0.0
    %302 = vmatprep.subr.mxu0 0.0
    %303 = vmatpush1.xpose.msra.mxu0 0.0
    %304 = vmatprep.subr.mxu0 0.0
    %305 = vmatpush1.xpose.msra.mxu0 0.0
    %306 = vmatprep.subr.mxu0 0.0
    %307 = vmatpush1.xpose.msra.mxu0 0.0
    %308 = vmatprep.subr.mxu0 0.0
    %309 = vmatpush1.xpose.msra.mxu0 0.0
    %310 = vmatprep.subr.mxu0 0.0
    %311 = vmatpush1.xpose.msra.mxu0 0.0
    %312 = vmatprep.subr.mxu0 0.0
    %313 = vmatpush1.xpose.msra.mxu0 0.0
    %314 = vmatprep.subr.mxu0 0.0
    %315 = vmatpush1.xpose.msra.mxu0 0.0
    %316 = vmatprep.subr.mxu0 0.0
    %317 = vmatpush1.xpose.msra.mxu0 0.0
    %318 = vmatprep.subr.mxu0 0.0
    %319 = vmatpush1.xpose.msra.mxu0 0.0
    %320 = vmatprep.subr.mxu0 0.0
    %321 = vmatpush1.xpose.msra.mxu0 0.0
    %322 = vmatprep.subr.mxu0 0.0
    %323 = vmatpush1.xpose.msra.mxu0 0.0
    %324 = vmatprep.subr.mxu0 0.0
    %325 = vmatpush1.xpose.msra.mxu0 0.0
    %326 = vmatprep.subr.mxu0 0.0
    %327 = vmatpush1.xpose.msra.mxu0 0.0
    %328 = vmatprep.subr.mxu0 0.0
    %329 = vmatpush1.xpose.msra.mxu0 0.0
    %330 = vmatprep.mubr.f32.mxu0 0.0
    %v331 = vand.u32 %v34, 4294901760
    %v332 = vsub.f32 %v34, %v331
    %v333 = vand.u32 %v332, 4294901760
    %334 = vmatmul.mubr.f32.gmra.mrb[0].mxu0 %v333
    %v335 = vpop.f32.mrb[0].mxu0
    %v336 = vadd.f32 %v262, %v335
    %v337 = vpop.f32.mrb[0].mxu0
    %338 = vdwg.mxu0
    %339 = vmatprep.subr.mxu0 0.0
    %v340 = vand.u32 %v37, 4294901760
    %v341 = vsub.f32 %v37, %v340
    %v342 = vand.u32 %v341, 4294901760
    %343 = vmatpush1.xpose.msra.mxu0 %v342
    %344 = vmatprep.subr.mxu0 0.0
    %345 = vmatpush1.xpose.msra.mxu0 0.0
    %346 = vmatprep.subr.mxu0 0.0
    %347 = vmatpush1.xpose.msra.mxu0 0.0
    %348 = vmatprep.subr.mxu0 0.0
    %349 = vmatpush1.xpose.msra.mxu0 0.0
    %350 = vmatprep.subr.mxu0 0.0
    %351 = vmatpush1.xpose.msra.mxu0 0.0
    %352 = vmatprep.subr.mxu0 0.0
    %353 = vmatpush1.xpose.msra.mxu0 0.0
    %354 = vmatprep.subr.mxu0 0.0
    %355 = vmatpush1.xpose.msra.mxu0 0.0
    %356 = vmatprep.subr.mxu0 0.0
    %357 = vmatpush1.xpose.msra.mxu0 0.0
    %358 = vmatprep.subr.mxu0 0.0
    %359 = vmatpush1.xpose.msra.mxu0 0.0
    %360 = vmatprep.subr.mxu0 0.0
    %361 = vmatpush1.xpose.msra.mxu0 0.0
    %362 = vmatprep.subr.mxu0 0.0
    %363 = vmatpush1.xpose.msra.mxu0 0.0
    %364 = vmatprep.subr.mxu0 0.0
    %365 = vmatpush1.xpose.msra.mxu0 0.0
    %366 = vmatprep.subr.mxu0 0.0
    %367 = vmatpush1.xpose.msra.mxu0 0.0
    %368 = vmatprep.subr.mxu0 0.0
    %369 = vmatpush1.xpose.msra.mxu0 0.0
    %370 = vmatprep.subr.mxu0 0.0
    %371 = vmatpush1.xpose.msra.mxu0 0.0
    %372 = vmatprep.subr.mxu0 0.0
    %373 = vmatpush1.xpose.msra.mxu0 0.0
    %374 = vmatprep.subr.mxu0 0.0
    %375 = vmatpush1.xpose.msra.mxu0 0.0
    %376 = vmatprep.subr.mxu0 0.0
    %377 = vmatpush1.xpose.msra.mxu0 0.0
    %378 = vmatprep.subr.mxu0 0.0
    %379 = vmatpush1.xpose.msra.mxu0 0.0
    %380 = vmatprep.subr.mxu0 0.0
    %381 = vmatpush1.xpose.msra.mxu0 0.0
    %382 = vmatprep.subr.mxu0 0.0
    %383 = vmatpush1.xpose.msra.mxu0 0.0
    %384 = vmatprep.subr.mxu0 0.0
    %385 = vmatpush1.xpose.msra.mxu0 0.0
    %386 = vmatprep.subr.mxu0 0.0
    %387 = vmatpush1.xpose.msra.mxu0 0.0
    %388 = vmatprep.subr.mxu0 0.0
    %389 = vmatpush1.xpose.msra.mxu0 0.0
    %390 = vmatprep.subr.mxu0 0.0
    %391 = vmatpush1.xpose.msra.mxu0 0.0
    %392 = vmatprep.subr.mxu0 0.0
    %393 = vmatpush1.xpose.msra.mxu0 0.0
    %394 = vmatprep.subr.mxu0 0.0
    %395 = vmatpush1.xpose.msra.mxu0 0.0
    %396 = vmatprep.subr.mxu0 0.0
    %397 = vmatpush1.xpose.msra.mxu0 0.0
    %398 = vmatprep.subr.mxu0 0.0
    %399 = vmatpush1.xpose.msra.mxu0 0.0
    %400 = vmatprep.subr.mxu0 0.0
    %401 = vmatpush1.xpose.msra.mxu0 0.0
    %402 = vmatprep.subr.mxu0 0.0
    %403 = vmatpush1.xpose.msra.mxu0 0.0
    %404 = vmatprep.subr.mxu0 0.0
    %405 = vmatpush1.xpose.msra.mxu0 0.0
    %406 = vmatprep.mubr.f32.mxu0 0.0
    %v407 = vand.u32 %v34, 4294901760
    %408 = vmatmul.mubr.f32.gmra.mrb[0].mxu0 %v407
    %v409 = vpop.f32.mrb[0].mxu0
    %v410 = vadd.f32 %v336, %v409
    %v411 = vpop.f32.mrb[0].mxu0
    %412 = vdwg.mxu0
    %413 = vmatprep.subr.mxu0 0.0
    %v414 = vand.u32 %v37, 4294901760
    %415 = vmatpush1.xpose.msra.mxu0 %v414
    %416 = vmatprep.subr.mxu0 0.0
    %417 = vmatpush1.xpose.msra.mxu0 0.0
    %418 = vmatprep.subr.mxu0 0.0
    %419 = vmatpush1.xpose.msra.mxu0 0.0
    %420 = vmatprep.subr.mxu0 0.0
    %421 = vmatpush1.xpose.msra.mxu0 0.0
    %422 = vmatprep.subr.mxu0 0.0
    %423 = vmatpush1.xpose.msra.mxu0 0.0
    %424 = vmatprep.subr.mxu0 0.0
    %425 = vmatpush1.xpose.msra.mxu0 0.0
    %426 = vmatprep.subr.mxu0 0.0
    %427 = vmatpush1.xpose.msra.mxu0 0.0
    %428 = vmatprep.subr.mxu0 0.0
    %429 = vmatpush1.xpose.msra.mxu0 0.0
    %430 = vmatprep.subr.mxu0 0.0
    %431 = vmatpush1.xpose.msra.mxu0 0.0
    %432 = vmatprep.subr.mxu0 0.0
    %433 = vmatpush1.xpose.msra.mxu0 0.0
    %434 = vmatprep.subr.mxu0 0.0
    %435 = vmatpush1.xpose.msra.mxu0 0.0
    %436 = vmatprep.subr.mxu0 0.0
    %437 = vmatpush1.xpose.msra.mxu0 0.0
    %438 = vmatprep.subr.mxu0 0.0
    %439 = vmatpush1.xpose.msra.mxu0 0.0
    %440 = vmatprep.subr.mxu0 0.0
    %441 = vmatpush1.xpose.msra.mxu0 0.0
    %442 = vmatprep.subr.mxu0 0.0
    %443 = vmatpush1.xpose.msra.mxu0 0.0
    %444 = vmatprep.subr.mxu0 0.0
    %445 = vmatpush1.xpose.msra.mxu0 0.0
    %446 = vmatprep.subr.mxu0 0.0
    %447 = vmatpush1.xpose.msra.mxu0 0.0
    %448 = vmatprep.subr.mxu0 0.0
    %449 = vmatpush1.xpose.msra.mxu0 0.0
    %450 = vmatprep.subr.mxu0 0.0
    %451 = vmatpush1.xpose.msra.mxu0 0.0
    %452 = vmatprep.subr.mxu0 0.0
    %453 = vmatpush1.xpose.msra.mxu0 0.0
    %454 = vmatprep.subr.mxu0 0.0
    %455 = vmatpush1.xpose.msra.mxu0 0.0
    %456 = vmatprep.subr.mxu0 0.0
    %457 = vmatpush1.xpose.msra.mxu0 0.0
    %458 = vmatprep.subr.mxu0 0.0
    %459 = vmatpush1.xpose.msra.mxu0 0.0
    %460 = vmatprep.subr.mxu0 0.0
    %461 = vmatpush1.xpose.msra.mxu0 0.0
    %462 = vmatprep.subr.mxu0 0.0
    %463 = vmatpush1.xpose.msra.mxu0 0.0
    %464 = vmatprep.subr.mxu0 0.0
    %465 = vmatpush1.xpose.msra.mxu0 0.0
    %466 = vmatprep.subr.mxu0 0.0
    %467 = vmatpush1.xpose.msra.mxu0 0.0
    %468 = vmatprep.subr.mxu0 0.0
    %469 = vmatpush1.xpose.msra.mxu0 0.0
    %470 = vmatprep.subr.mxu0 0.0
    %471 = vmatpush1.xpose.msra.mxu0 0.0
    %472 = vmatprep.subr.mxu0 0.0
    %473 = vmatpush1.xpose.msra.mxu0 0.0
    %474 = vmatprep.subr.mxu0 0.0
    %475 = vmatpush1.xpose.msra.mxu0 0.0
    %476 = vmatprep.subr.mxu0 0.0
    %477 = vmatpush1.xpose.msra.mxu0 0.0
    %478 = vmatprep.mubr.f32.mxu0 0.0
    %v479 = vand.u32 %v34, 4294901760
    %480 = vmatmul.mubr.f32.gmra.mrb[0].mxu0 %v479
    %v481 = vpop.f32.mrb[0].mxu0
    %v482 = vadd.f32 %v410, %v481
    %v483 = vpop.f32.mrb[0].mxu0
    %484 = vdwg.mxu0
    %v485 = vxor.u32 %v482, 2147483648
    %v486 = vmul.f32 %v485, 1.442695
    %v487 = vpow.pop %v486
    %v488 = vadd.f32 %v487, 1.0
    %v489 = vrcp.pop %v488
    %v490 = vmul.f32 1.0, %v489
    %vm491 = vcmask 57344
    %492 = vst.msk [vmem:[#allocation6] sm:$0x1] %vm491, %v490
    // Predicated region
    $region18: #{tpu_custom_call.1} parent=1 // pred_check
      _
    $region19: #{tpu_custom_call.1} parent=1 // pred_check_branch
      %494 = sbr.rel (0) target = $region21
    $region20: #{tpu_custom_call.1} parent=1 // pred_region
      %s496 = ssub.s32 16, 16
      %497 = vsyncadd [#allocation5], %s496
      %s499 = sshll.u32 [#allocation6], 4
      %s500 = int_to_ptr.vmem [resolvable:$true] %s499
      %502 = dma.vmem_to_hbm [thread:$0]  %s500, 16, %s3, [#allocation5]
    $region21: #{tpu_custom_call.1} parent=1 // pred_fallthru
      _
    // Predicated region
    $region22: #{tpu_custom_call.1} parent=1 // pred_check
      _
    $region23: #{tpu_custom_call.1} parent=1 // pred_check_branch
      %504 = sbr.rel (0) target = $region25
    $region24: #{tpu_custom_call.1} parent=1 // pred_region
      %505 = dma.done [#allocation5], 16
    $region25: #{tpu_custom_call.1} parent=1 // pred_fallthru
      _
    %506 = vsyncpa [#allocation4], 1
    %507 = vsyncpa [#allocation5], 1

</llo_original>
